<compile_context>
chip_gen: v5e
topology: v5e:2x2
jax: 0.10.0
libtpu: 0.0.40
codegen_flags: <defaults>
</compile_context>

<pallas_src>
import jax
import jax.numpy as jnp
from jax import lax
from jax.experimental import pallas as pl
from jax.experimental.pallas import tpu as pltpu


# ---------------------------------------------------------------------------
# Kernel 1: conv-as-GEMM (bf16 inputs, f32 MXU accumulate) + per-block stats.
# ---------------------------------------------------------------------------
def _gemm_stats_kernel(a_ref, b_ref, conv_ref, sum_ref, ssq_ref):
    acc = jnp.dot(a_ref[...], b_ref[...], preferred_element_type=jnp.float32)
    conv_ref[...] = acc.astype(conv_ref.dtype)
    sum_ref[...] = jnp.sum(acc, axis=0, keepdims=True)[None]        # (1,1,C)
    ssq_ref[...] = jnp.sum(acc * acc, axis=0, keepdims=True)[None]  # (1,1,C)


# ---------------------------------------------------------------------------
# Kernel 2: per batch of F frames, fused BN affine + ReLU + strided 3x3 max.
# Only the (H_pool, W_pool) strided output is computed.  Zero padding stands
# in for -inf because y >= 0 after ReLU and every window overlaps valid data.
# ---------------------------------------------------------------------------
def _bn_relu_pool_kernel(x_ref, scale_ref, shift_ref, o_ref, wpad_ref):
    F, H, W, C = x_ref.shape
    HP, WP = o_ref.shape[1], o_ref.shape[2]

    # BN affine + ReLU in f32 (conv block arrives in bf16).
    y = jnp.maximum(
        x_ref[...].astype(jnp.float32) * scale_ref[...] + shift_ref[...], 0.0)

    # Vertical 3-tap / stride-2 max: rowmax[i] = max(y[2i-1], y[2i], y[2i+1]).
    # Splitting the (non-minor) H axis into (HP, 2) is a free reshape.
    yr = y.reshape(F, HP, 2, W, C)
    even, odd = yr[:, :, 0], yr[:, :, 1]          # y[2i], y[2i+1]
    m01 = jnp.maximum(even, odd)
    # y[2i-1] = odd[i-1]; the i==0 window's missing row is the zero border.

    # Horizontal direction via a zero-padded VMEM scratch (F, HP, W+2, C):
    # only the two border columns need zeros; the interior is fully rewritten
    # every iteration (safe under "parallel" grid semantics, no carried state).
    wpad_ref[:, :, 0:1, :] = jnp.zeros((F, HP, 1, C), jnp.float32)
    wpad_ref[:, :, W + 1:W + 2, :] = jnp.zeros((F, HP, 1, C), jnp.float32)
    wpad_ref[:, 0:1, 1:W + 1, :] = m01[:, 0:1]
    wpad_ref[:, 1:, 1:W + 1, :] = jnp.maximum(m01[:, 1:], odd[:, :HP - 1])

    # colmax[j] = max(rowmax[2j-1], rowmax[2j], rowmax[2j+1]) via stride-2
    # sublane reads of the padded scratch.
    m = wpad_ref[:, :, pl.ds(0, WP, stride=2), :]
    m = jnp.maximum(m, wpad_ref[:, :, pl.ds(1, WP, stride=2), :])
    m = jnp.maximum(m, wpad_ref[:, :, pl.ds(2, WP, stride=2), :])
    o_ref[...] = m


def resnet_basic_stem(x, weight, gamma, beta, *, kernel, stride, padding,
                      eps=1e-5, tm=512, frames_per_step=8):
    """Forward pass of ResNetBasicStem.  x: [N, C_in, T, H, W] (NCDHW)."""
    N, C_in, T, H, W = x.shape
    C_out = weight.shape[0]
    KT, KH, KW = kernel
    st, sh, sw = stride
    pt, ph, pw = padding

    T_out = (T + 2 * pt - KT) // st + 1
    H_out = (H + 2 * ph - KH) // sh + 1
    W_out = (W + 2 * pw - KW) // sw + 1
    H_pool = (H_out + 2 - 3) // 2 + 1
    W_pool = (W_out + 2 - 3) // 2 + 1
    # Demo-wrapper restriction: the reshape-based vertical pooling assumes an
    # even conv-output height/width (true for standard stem configurations).
    assert H_out % 2 == 0 and W_out % 2 == 0, (H_out, W_out)

    # ---- glue: im2col patch extraction in bf16 (pure data movement) --------
    # TODO(synk): implicit in-kernel im2col (tap loop over the KT*KH*KW
    # offsets) to avoid materializing the ~27x-expanded activation in HBM.
    xb = x.astype(jnp.bfloat16)
    xp = jnp.pad(xb, ((0, 0), (0, 0), (pt, pt), (ph, ph), (pw, pw)))
    patches = []
    for kt in range(KT):
        for kh in range(KH):
            for kw in range(KW):
                patches.append(
                    xp[:, :,
                       kt:kt + st * T_out:st,
                       kh:kh + sh * H_out:sh,
                       kw:kw + sw * W_out:sw])
    p = jnp.stack(patches, axis=2)            # [N, C_in, KKK, T_out, H_out, W_out]
    p = p.transpose(0, 3, 4, 5, 1, 2)         # [N, T_out, H_out, W_out, C_in, KKK]
    M = N * T_out * H_out * W_out
    K = C_in * KT * KH * KW
    A = p.reshape(M, K)
    # weight [C_out, C_in, KT, KH, KW] -> [K, C_out], same (C_in, kt, kh, kw) order
    Bm = weight.reshape(C_out, K).T.astype(jnp.bfloat16)

    # Pad M to the tile so arbitrary shapes work; zero rows add nothing to the
    # batch statistics and are sliced off afterwards.
    M_pad = pl.cdiv(M, tm) * tm
    if M_pad != M:
        A = jnp.pad(A, ((0, M_pad - M), (0, 0)))
    G = M_pad // tm

    # ---- Pallas kernel 1: conv GEMM + per-block batch statistics -----------
    # Per-step VMEM at tm=512 (double-buffered bf16 A/B/conv blocks) is well
    # under 1 MiB, far below the scoped VMEM default on v5e/v6e/v7x.
    conv, psum, pssq = pl.pallas_call(
        _gemm_stats_kernel,
        out_shape=(
            jax.ShapeDtypeStruct((M_pad, C_out), jnp.bfloat16),
            jax.ShapeDtypeStruct((G, 1, C_out), jnp.float32),
            jax.ShapeDtypeStruct((G, 1, C_out), jnp.float32),
        ),
        grid=(G,),
        in_specs=[
            pl.BlockSpec((tm, K), lambda i: (i, 0)),
            pl.BlockSpec((K, C_out), lambda i: (0, 0)),
        ],
        out_specs=(
            pl.BlockSpec((tm, C_out), lambda i: (i, 0)),
            pl.BlockSpec((1, 1, C_out), lambda i: (i, 0, 0)),
            pl.BlockSpec((1, 1, C_out), lambda i: (i, 0, 0)),
        ),
        compiler_params=pltpu.CompilerParams(
            dimension_semantics=("parallel",)),
    )(A, Bm)

    # ---- BN (train-mode batch stats) folded to a per-channel affine --------
    cnt = jnp.float32(M)
    csum = jnp.sum(psum[:, 0, :], axis=0)
    cssq = jnp.sum(pssq[:, 0, :], axis=0)
    mean = csum / cnt
    var = cssq / cnt - mean * mean            # biased variance (PyTorch BN norm)
    scale = gamma.astype(jnp.float32) / jnp.sqrt(var + eps)
    shift = beta.astype(jnp.float32) - mean * scale
    scale2 = scale.reshape(1, C_out)
    shift2 = shift.reshape(1, C_out)

    # ---- Pallas kernel 2: fused BN + ReLU + strided 3x3 max, F frames/step -
    NT = N * T_out
    conv_fr = (conv[:M] if M_pad != M else conv).reshape(NT, H_out, W_out, C_out)
    F = min(frames_per_step, NT)
    NT_pad = pl.cdiv(NT, F) * F
    if NT_pad != NT:
        conv_fr = jnp.pad(conv_fr, ((0, NT_pad - NT), (0, 0), (0, 0), (0, 0)))

    # TODO(synk): fold W_pool into the lane dim (W_pool*C_out >= 128) for
    # lane-dense output stores when C_out < 128.
    pooled = pl.pallas_call(
        _bn_relu_pool_kernel,
        out_shape=jax.ShapeDtypeStruct((NT_pad, H_pool, W_pool, C_out),
                                       jnp.float32),
        grid=(NT_pad // F,),
        in_specs=[
            pl.BlockSpec((F, H_out, W_out, C_out), lambda i: (i, 0, 0, 0)),
            pl.BlockSpec((1, C_out), lambda i: (0, 0)),
            pl.BlockSpec((1, C_out), lambda i: (0, 0)),
        ],
        out_specs=pl.BlockSpec((F, H_pool, W_pool, C_out),
                               lambda i: (i, 0, 0, 0)),
        scratch_shapes=[pltpu.VMEM((F, H_pool, W_out + 2, C_out), jnp.float32)],
        compiler_params=pltpu.CompilerParams(
            dimension_semantics=("parallel",)),
    )(conv_fr, scale2, shift2)

    pooled = pooled[:NT] if NT_pad != NT else pooled
    # Final layout back to NCDHW to honour the PyTorch module's contract.
    out = pooled.reshape(N, T_out, H_pool, W_pool, C_out).transpose(0, 4, 1, 2, 3)
    return out  # [N, C_out, T_out, H_pool, W_pool]


def reference_stem(x, weight, gamma, beta, *, kernel, stride, padding, eps):
    """Pure-JAX reference of the PyTorch forward (train-mode BN)."""
    pt, ph, pw = padding
    conv = lax.conv_general_dilated(
        x, weight, window_strides=stride,
        padding=[(pt, pt), (ph, ph), (pw, pw)],
        dimension_numbers=("NCDHW", "OIDHW", "NCDHW"),
        precision=lax.Precision.HIGHEST)
    m = conv.mean(axis=(0, 2, 3, 4), keepdims=True)
    v = jnp.mean((conv - m) ** 2, axis=(0, 2, 3, 4), keepdims=True)
    g = gamma.reshape(1, -1, 1, 1, 1)
    b = beta.reshape(1, -1, 1, 1, 1)
    y = jnp.maximum((conv - m) / jnp.sqrt(v + eps) * g + b, 0.0)
    return lax.reduce_window(
        y, -jnp.inf, lax.max,
        window_dimensions=(1, 1, 1, 3, 3),
        window_strides=(1, 1, 1, 2, 2),
        padding=((0, 0), (0, 0), (0, 0), (1, 1), (1, 1)))


if __name__ == "__main__":
    key = jax.random.PRNGKey(0)
    k1, k2, k3, k4 = jax.random.split(key, 4)

    N, C_in, T, H, W = 2, 4, 8, 16, 16
    C_out = 32
    kernel = (3, 3, 3)
    stride = (1, 2, 2)
    padding = (1, 1, 1)
    eps = 1e-5

    x = jax.random.normal(k1, (N, C_in, T, H, W), dtype=jnp.float32)
    Kdim = C_in * kernel[0] * kernel[1] * kernel[2]
    weight = jax.random.normal(k2, (C_out, C_in) + kernel, dtype=jnp.float32) / jnp.sqrt(Kdim)
    gamma = 1.0 + 0.1 * jax.random.normal(k3, (C_out,), dtype=jnp.float32)
    beta = 0.1 * jax.random.normal(k4, (C_out,), dtype=jnp.float32)

    out = resnet_basic_stem(x, weight, gamma, beta,
                            kernel=kernel, stride=stride, padding=padding, eps=eps)
    out = jax.block_until_ready(out)

    ref = reference_stem(x, weight, gamma, beta,
                         kernel=kernel, stride=stride, padding=padding, eps=eps)
    assert out.shape == ref.shape, (out.shape, ref.shape)
    assert jnp.allclose(out, ref, rtol=2e-2, atol=2e-2), \
        float(jnp.max(jnp.abs(out - ref)))
    print("KERNEL_OK")
</pallas_src>

<mosaic_0001>
module attributes {stable_mosaic.version = 11 : i64} {
  func.func @_gemm_stats_kernel(%arg0: i32, %arg1: memref<512x108xbf16, #tpu.memory_space<vmem>>, %arg2: memref<108x32xbf16, #tpu.memory_space<vmem>>, %arg3: memref<512x32xbf16, #tpu.memory_space<vmem>>, %arg4: memref<1x1x32xf32, #tpu.memory_space<vmem>>, %arg5: memref<1x1x32xf32, #tpu.memory_space<vmem>>) attributes {dimension_semantics = [#tpu.dimension_semantics<parallel>], iteration_bounds = array<i64: 2>, scalar_prefetch = 0 : i64, scratch_operands = 0 : i64, tpu.core_type = #tpu.core_type<tc>, window_params = [{transform_indices = @transform_0, window_bounds = array<i64: 512, 108>}, {pipeline_mode = #tpu.pipeline_mode<synchronous>, transform_indices = @transform_1, window_bounds = array<i64: 108, 32>}, {transform_indices = @transform_2, window_bounds = array<i64: 512, 32>}, {transform_indices = @transform_3, window_bounds = array<i64: 1, 1, 32>}, {transform_indices = @transform_4, window_bounds = array<i64: 1, 1, 32>}]} {
    %c0 = arith.constant 0 : index
    %c0_0 = arith.constant 0 : index
    %0 = vector.load %arg1[%c0, %c0_0] : memref<512x108xbf16, #tpu.memory_space<vmem>>, vector<512x108xbf16>
    %c0_1 = arith.constant 0 : index
    %c0_2 = arith.constant 0 : index
    %1 = vector.load %arg2[%c0_1, %c0_2] : memref<108x32xbf16, #tpu.memory_space<vmem>>, vector<108x32xbf16>
    %cst = arith.constant dense<0.000000e+00> : vector<512x32xf32>
    %2 = tpu.matmul %0, %1, %cst {dimension_numbers = #tpu.dot_dimension_numbers<[1], [0], [0], [1], [0, 0, 1, 1], [], []>} : vector<512x108xbf16>, vector<108x32xbf16>, vector<512x32xf32> -> vector<512x32xf32>
    %3 = arith.truncf %2 : vector<512x32xf32> to vector<512x32xbf16>
    %c0_3 = arith.constant 0 : index
    %c0_4 = arith.constant 0 : index
    %4 = vector.load %arg3[%c0_3, %c0_4] : memref<512x32xbf16, #tpu.memory_space<vmem>>, vector<512x32xbf16>
    tpu.vector_store %arg3[%c0_3, %c0_4], %3 {strides = array<i32>} : memref<512x32xbf16, #tpu.memory_space<vmem>>, vector<512x32xbf16>,
    %cst_5 = arith.constant dense<0.000000e+00> : vector<32xf32>
    %5 = vector.multi_reduction <add>, %2, %cst_5 [0] : vector<512x32xf32> to vector<32xf32>
    %6 = vector.shape_cast %5 : vector<32xf32> to vector<1x32xf32>
    %7 = vector.shape_cast %6 : vector<1x32xf32> to vector<1x1x32xf32>
    %c0_6 = arith.constant 0 : index
    %c0_7 = arith.constant 0 : index
    %c0_8 = arith.constant 0 : index
    %8 = vector.load %arg4[%c0_6, %c0_7, %c0_8] : memref<1x1x32xf32, #tpu.memory_space<vmem>>, vector<1x1x32xf32>
    tpu.vector_store %arg4[%c0_6, %c0_7, %c0_8], %7 {strides = array<i32>} : memref<1x1x32xf32, #tpu.memory_space<vmem>>, vector<1x1x32xf32>,
    %9 = arith.mulf %2, %2 : vector<512x32xf32>
    %cst_9 = arith.constant dense<0.000000e+00> : vector<32xf32>
    %10 = vector.multi_reduction <add>, %9, %cst_9 [0] : vector<512x32xf32> to vector<32xf32>
    %11 = vector.shape_cast %10 : vector<32xf32> to vector<1x32xf32>
    %12 = vector.shape_cast %11 : vector<1x32xf32> to vector<1x1x32xf32>
    %c0_10 = arith.constant 0 : index
    %c0_11 = arith.constant 0 : index
    %c0_12 = arith.constant 0 : index
    %13 = vector.load %arg5[%c0_10, %c0_11, %c0_12] : memref<1x1x32xf32, #tpu.memory_space<vmem>>, vector<1x1x32xf32>
    tpu.vector_store %arg5[%c0_10, %c0_11, %c0_12], %12 {strides = array<i32>} : memref<1x1x32xf32, #tpu.memory_space<vmem>>, vector<1x1x32xf32>,
    return
  }
  func.func @transform_0(%arg0: i32) -> (i32, i32) {
    %c0_i32 = arith.constant 0 : i32
    %c0_i32_0 = arith.constant 0 : i32
    return %arg0, %c0_i32 : i32, i32
  }
  func.func @transform_1(%arg0: i32) -> (i32, i32) {
    %c0_i32 = arith.constant 0 : i32
    %c0_i32_0 = arith.constant 0 : i32
    %c0_i32_1 = arith.constant 0 : i32
    return %c0_i32, %c0_i32_0 : i32, i32
  }
  func.func @transform_2(%arg0: i32) -> (i32, i32) {
    %c0_i32 = arith.constant 0 : i32
    %c0_i32_0 = arith.constant 0 : i32
    return %arg0, %c0_i32 : i32, i32
  }
  func.func @transform_3(%arg0: i32) -> (i32, i32, i32) {
    %c0_i32 = arith.constant 0 : i32
    %c0_i32_0 = arith.constant 0 : i32
    %c0_i32_1 = arith.constant 0 : i32
    return %arg0, %c0_i32, %c0_i32_0 : i32, i32, i32
  }
  func.func @transform_4(%arg0: i32) -> (i32, i32, i32) {
    %c0_i32 = arith.constant 0 : i32
    %c0_i32_0 = arith.constant 0 : i32
    %c0_i32_1 = arith.constant 0 : i32
    return %arg0, %c0_i32, %c0_i32_0 : i32, i32, i32
  }
}

</mosaic_0001>

<llo_original>
// kernel: tpu_custom_call.1
$region0: #{tpu_custom_call.1}
  #allocation0 [shape = 'u32[]', space=smem, size = 0x4, offset = 0x4, fixed_abs, tag = 'smem constant byte address 0x4 - core index']
  #allocation1 [shape = 'u32[72,128]{1,0:T(1,128)}', space=vmem, size = 0x9000, scoped, tag = 'internal scratch']
  %s0 = inlined_call_operand.vmem [shape: bf16[1024,108], index: 0, kind: input, shape index: {}]
  %s1 = inlined_call_operand.vmem [shape: bf16[108,32], index: 1, kind: input, shape index: {}]
  %s2 = inlined_call_operand.vmem [shape: bf16[1024,32], index: 2, kind: output, shape index: {0}]
  %s3 = inlined_call_operand.hbm [shape: f32[2,1,32], index: 3, kind: output, shape index: {1}]
  %s4 = inlined_call_operand.hbm [shape: f32[2,1,32], index: 4, kind: output, shape index: {2}]
  %5 = xla_tuple %s2, %s3, %s4
  %s6 = sld [smem:[#allocation0]]
  $region57: #{tpu_custom_call.1} parent=0
    _
  %s8 = ssub.s32 1, %s6
  %s9 = scalar_select 0, %s8, %s6
  $region1: #{tpu_custom_call.1} parent=0
    #allocation2 [shape = 'u8[1024]{0}', space=vmem, size = 0x400, scoped, tag = 'output window, operand 1']
    #allocation3 [shape = 's32[2]{0}', space=sflag, size = 0x8, scoped, tag = 'scoped memory for tpu_custom_call.1']
    #allocation4 [shape = 'u8[1024]{0}', space=vmem, size = 0x400, scoped, tag = 'output window, operand 2']
    #allocation5 [shape = 's32[2]{0}', space=sflag, size = 0x8, scoped, tag = 'scoped memory for tpu_custom_call.1']
    %10 = vsyncpa [#allocation3], 0
    %s11 = scalar_lea.sflag [#allocation3], 1
    %12 = vsyncpa %s11, 0
    %13 = vsyncpa [#allocation5], 0
    %s14 = scalar_lea.sflag [#allocation5], 1
    %15 = vsyncpa %s14, 0
    loop: start=0, step=1, limit=4
    $region2: #{tpu_custom_call.1} parent=1 // loop_pre_header
      _
    $region3: #{tpu_custom_call.1} parent=1 // loop_header
      %s17 = sphi 0, %s21
      %p18 = scmp.ge.s32.totalorder %s17, 4
      %s27 = sphi 0, %s29
      %s30 = sphi 0, %s27
      %s31 = sphi 0, %s30
      %s47 = sphi 0, %s31
      %s51 = sphi 0, %s51
      %s53 = sphi 0, %s51
      %s54 = sphi 0, %s53
      %s68 = sphi 0, %s54
      %s74 = sphi 0, %s76
      %s77 = sphi 0, %s74
      %s78 = sphi 0, %s77
      %s94 = sphi 0, %s78
      %s100 = sphi 0, %s102
      %s103 = sphi 0, %s100
      %s104 = sphi 0, %s103
      %s120 = sphi 0, %s104
      %s126 = sphi 0, %s128
      %s129 = sphi 0, %s126
      %s130 = sphi 0, %s129
      %s146 = sphi 0, %s130
    $region4: #{tpu_custom_call.1} parent=1 // loop_header_branch
      %20 = sbr.rel (%p18) target = $region8
    $region5: #{tpu_custom_call.1} parent=1 // loop_body
      %s22 = ssub.s32 %s17, 1
      %s23 = ssub.s32 %s17, 2
      %s24 = sadd.s32 %s17, 1
      %s25 = ssub.s32 %s17, %s24
      %p26 = scmp.eq.s32.totalorder %s25, 0
      %s28 = sadd.s32 %s27, 1
      %s29 = scalar_select %p26, %s27, %s28
      %p32 = pneg %p26
      %p33 = scmp.eq.s32.totalorder %s17, 1
      %p34 = por %p32, %p33
      %p35 = scmp.ne.s32.totalorder %s27, %s30
      %p36 = scmp.eq.s32.totalorder %s17, 0
      %p37 = por %p35, %p36
      %p38 = scmp.ne.s32.totalorder %s27, %s30
      %p39 = scmp.eq.s32.totalorder %s22, 1
      %p40 = por %p38, %p39
      %p41 = scmp.ne.s32.totalorder %s30, %s31
      %p42 = scmp.eq.s32.totalorder %s22, 0
      %p43 = por %p41, %p42
      %p44 = scmp.ne.s32.totalorder %s30, %s31
      %p45 = scmp.eq.s32.totalorder %s23, 1
      %p46 = por %p44, %p45
      %p48 = scmp.ne.s32.totalorder %s31, %s47
      %p49 = scmp.eq.s32.totalorder %s23, 0
      %p50 = por %p48, %p49
      %s52 = sadd.s32 %s51, 1
      %p55 = scmp.eq.s32.totalorder %s17, 1
      %p56 = scmp.ne.s32.totalorder %s51, %s53
      %p57 = scmp.eq.s32.totalorder %s17, 0
      %p58 = por %p56, %p57
      %p59 = scmp.ne.s32.totalorder %s51, %s53
      %p60 = scmp.eq.s32.totalorder %s22, 1
      %p61 = por %p59, %p60
      %p62 = scmp.ne.s32.totalorder %s53, %s54
      %p63 = scmp.eq.s32.totalorder %s22, 0
      %p64 = por %p62, %p63
      %p65 = scmp.ne.s32.totalorder %s53, %s54
      %p66 = scmp.eq.s32.totalorder %s23, 1
      %p67 = por %p65, %p66
      %p69 = scmp.ne.s32.totalorder %s54, %s68
      %p70 = scmp.eq.s32.totalorder %s23, 0
      %p71 = por %p69, %p70
      %s72 = ssub.s32 %s17, %s24
      %p73 = scmp.eq.s32.totalorder %s72, 0
      %s75 = sadd.s32 %s74, 1
      %s76 = scalar_select %p73, %s74, %s75
      %p79 = pneg %p73
      %p80 = scmp.eq.s32.totalorder %s17, 1
      %p81 = por %p79, %p80
      %p82 = scmp.ne.s32.totalorder %s74, %s77
      %p83 = scmp.eq.s32.totalorder %s17, 0
      %p84 = por %p82, %p83
      %p85 = scmp.ne.s32.totalorder %s74, %s77
      %p86 = scmp.eq.s32.totalorder %s22, 1
      %p87 = por %p85, %p86
      %p88 = scmp.ne.s32.totalorder %s77, %s78
      %p89 = scmp.eq.s32.totalorder %s22, 0
      %p90 = por %p88, %p89
      %p91 = scmp.ne.s32.totalorder %s77, %s78
      %p92 = scmp.eq.s32.totalorder %s23, 1
      %p93 = por %p91, %p92
      %p95 = scmp.ne.s32.totalorder %s78, %s94
      %p96 = scmp.eq.s32.totalorder %s23, 0
      %p97 = por %p95, %p96
      %s98 = ssub.s32 %s17, %s24
      %p99 = scmp.eq.s32.totalorder %s98, 0
      %s101 = sadd.s32 %s100, 1
      %s102 = scalar_select %p99, %s100, %s101
      %p105 = pneg %p99
      %p106 = scmp.eq.s32.totalorder %s17, 1
      %p107 = por %p105, %p106
      %p108 = scmp.ne.s32.totalorder %s100, %s103
      %p109 = scmp.eq.s32.totalorder %s17, 0
      %p110 = por %p108, %p109
      %p111 = scmp.ne.s32.totalorder %s100, %s103
      %p112 = scmp.eq.s32.totalorder %s22, 1
      %p113 = por %p111, %p112
      %p114 = scmp.ne.s32.totalorder %s103, %s104
      %p115 = scmp.eq.s32.totalorder %s22, 0
      %p116 = por %p114, %p115
      %p117 = scmp.ne.s32.totalorder %s103, %s104
      %p118 = scmp.eq.s32.totalorder %s23, 1
      %p119 = por %p117, %p118
      %p121 = scmp.ne.s32.totalorder %s104, %s120
      %p122 = scmp.eq.s32.totalorder %s23, 0
      %p123 = por %p121, %p122
      %s124 = ssub.s32 %s17, %s24
      %p125 = scmp.eq.s32.totalorder %s124, 0
      %s127 = sadd.s32 %s126, 1
      %s128 = scalar_select %p125, %s126, %s127
      %p131 = pneg %p125
      %p132 = scmp.eq.s32.totalorder %s17, 1
      %p133 = por %p131, %p132
      %p134 = scmp.ne.s32.totalorder %s126, %s129
      %p135 = scmp.eq.s32.totalorder %s17, 0
      %p136 = por %p134, %p135
      %p137 = scmp.ne.s32.totalorder %s126, %s129
      %p138 = scmp.eq.s32.totalorder %s22, 1
      %p139 = por %p137, %p138
      %p140 = scmp.ne.s32.totalorder %s129, %s130
      %p141 = scmp.eq.s32.totalorder %s22, 0
      %p142 = por %p140, %p141
      %p143 = scmp.ne.s32.totalorder %s129, %s130
      %p144 = scmp.eq.s32.totalorder %s23, 1
      %p145 = por %p143, %p144
      %p147 = scmp.ne.s32.totalorder %s130, %s146
      %p148 = scmp.eq.s32.totalorder %s23, 0
      %p149 = por %p147, %p148
      %p150 = scmp.le.s32.totalorder 1, %s17
      %p151 = scmp.lt.s32.totalorder %s17, 3
      %p152 = pnand %p150, %p151
      %p153 = pneg %p152
      // Predicated region
      $region9: #{tpu_custom_call.1} parent=5 // pred_check
        _
      $region10: #{tpu_custom_call.1} parent=5 // pred_check_branch
        %155 = sbr.rel (%p152) target = $region12
      $region11: #{tpu_custom_call.1} parent=5 // pred_region
        %s156 = ssub.s32 %s17, 1
        // Predicated region
        $region13: #{tpu_custom_call.1} parent=11 // pred_check
          %p157 = pneg %p64
        $region14: #{tpu_custom_call.1} parent=11 // pred_check_branch
          %159 = sbr.rel (%p157) target = $region16
        $region15: #{tpu_custom_call.1} parent=11 // pred_region
          _
        $region16: #{tpu_custom_call.1} parent=11 // pred_fallthru
          _
      $region12: #{tpu_custom_call.1} parent=5 // pred_fallthru
        _
      %p160 = scmp.lt.s32.totalorder %s17, 2
      // Predicated region
      $region17: #{tpu_custom_call.1} parent=5 // pred_check
        %p161 = pneg %p160
      $region18: #{tpu_custom_call.1} parent=5 // pred_check_branch
        %163 = sbr.rel (%p161) target = $region20
      $region19: #{tpu_custom_call.1} parent=5 // pred_region
        // Predicated region
        $region21: #{tpu_custom_call.1} parent=19 // pred_check
          %p164 = pneg %p37
        $region22: #{tpu_custom_call.1} parent=19 // pred_check_branch
          %166 = sbr.rel (%p164) target = $region24
        $region23: #{tpu_custom_call.1} parent=19 // pred_region
          %s167 = smul.u32 64, %s17
          %p168 = scmp.lt.s32.totalorder %s167, 127
          %s169 = scalar_select %p168, %s167, 127
          %s170 = smul.addr %s169, 4
          %s171 = scalar_lea.vmem %s0, %s170
          %s172 = smul.u32 64, %s17
        $region24: #{tpu_custom_call.1} parent=19 // pred_fallthru
          _
      $region20: #{tpu_custom_call.1} parent=5 // pred_fallthru
        _
      %p173 = scmp.le.s32.totalorder 1, %s17
      %p174 = scmp.lt.s32.totalorder %s17, 3
      %p175 = pnand %p173, %p174
      %p176 = pneg %p175
      // Predicated region
      $region25: #{tpu_custom_call.1} parent=5 // pred_check
        _
      $region26: #{tpu_custom_call.1} parent=5 // pred_check_branch
        %178 = sbr.rel (%p175) target = $region28
      $region27: #{tpu_custom_call.1} parent=5 // pred_region
        %s179 = ssub.s32 %s17, 1
        %s180 = smul.u32 64, %s22
        %p181 = scmp.lt.s32.totalorder %s180, 127
        %s182 = scalar_select %p181, %s180, 127
        %s183 = smul.addr %s182, 4
        %s184 = scalar_lea.vmem %s0, %s183
        %p185 = pneg %p43
        %p186 = pneg %p40
        %p187 = pneg %p64
        %p188 = pneg %p61
        %p189 = pneg %p90
        %p190 = pneg %p87
        %s191 = smul.u32 64, %s22
        %p192 = scmp.lt.s32.totalorder %s191, 127
        %s193 = scalar_select %p192, %s191, 127
        %s194 = smul.addr %s193, 4
        %s195 = scalar_lea.vmem %s2, %s194
        %p196 = pneg %p116
        %p197 = pneg %p113
        %s198 = sand.u32 %s103, 1
        %s199 = scalar_lea.sflag [#allocation3], %s198
        %s200 = sand.u32 %s103, 1
        %s201 = scalar_lea.vmem [#allocation2], %s200
        %p202 = pneg %p142
        %p203 = pneg %p139
        %s204 = sand.u32 %s129, 1
        %s205 = scalar_lea.sflag [#allocation5], %s204
        %s206 = sand.u32 %s129, 1
        %s207 = scalar_lea.vmem [#allocation4], %s206
        %s208 = smul.u32 64, %s22
        %p209 = scmp.lt.s32.totalorder %s208, 127
        %s210 = scalar_select %p209, %s208, 127
        %s211 = smul.addr %s210, 4
        %s212 = scalar_lea.vmem %s0, %s211
        %s213 = smul.u32 64, %s22
        %s214 = smul.u32 64, %s22
        %p215 = scmp.lt.s32.totalorder %s214, 127
        %s216 = scalar_select %p215, %s214, 127
        %s217 = smul.addr %s216, 4
        %s218 = scalar_lea.vmem %s2, %s217
        %s219 = smul.u32 64, %s22
        %v221 = vld [vmem:[%s212] sm:$0xf]
        %v222 = vld [vmem:[%s212 + $0x4] sm:$0xf]
        %v223 = vld [vmem:[%s212 + $0x8] sm:$0xf]
        %v224 = vld [vmem:[%s212 + $0xc] sm:$0xf]
        %v225 = vld [vmem:[%s212 + $0x10] sm:$0xf]
        %v226 = vld [vmem:[%s212 + $0x14] sm:$0xf]
        %v227 = vld [vmem:[%s212 + $0x18] sm:$0xf]
        %v228 = vld [vmem:[%s212 + $0x1c] sm:$0xf]
        %v229 = vld [vmem:[%s212 + $0x20] sm:$0xf]
        %v230 = vld [vmem:[%s212 + $0x24] sm:$0xf]
        %v231 = vld [vmem:[%s212 + $0x28] sm:$0xf]
        %v232 = vld [vmem:[%s212 + $0x2c] sm:$0xf]
        %v233 = vld [vmem:[%s212 + $0x30] sm:$0xf]
        %v234 = vld [vmem:[%s212 + $0x34] sm:$0xf]
        %v235 = vld [vmem:[%s212 + $0x38] sm:$0xf]
        %v236 = vld [vmem:[%s212 + $0x3c] sm:$0xf]
        %v237 = vld [vmem:[%s212 + $0x40] sm:$0xf]
        %v238 = vld [vmem:[%s212 + $0x44] sm:$0xf]
        %v239 = vld [vmem:[%s212 + $0x48] sm:$0xf]
        %v240 = vld [vmem:[%s212 + $0x4c] sm:$0xf]
        %v241 = vld [vmem:[%s212 + $0x50] sm:$0xf]
        %v242 = vld [vmem:[%s212 + $0x54] sm:$0xf]
        %v243 = vld [vmem:[%s212 + $0x58] sm:$0xf]
        %v244 = vld [vmem:[%s212 + $0x5c] sm:$0xf]
        %v245 = vld [vmem:[%s212 + $0x60] sm:$0xf]
        %v246 = vld [vmem:[%s212 + $0x64] sm:$0xf]
        %v247 = vld [vmem:[%s212 + $0x68] sm:$0xf]
        %v248 = vld [vmem:[%s212 + $0x6c] sm:$0xf]
        %v249 = vld [vmem:[%s212 + $0x70] sm:$0xf]
        %v250 = vld [vmem:[%s212 + $0x74] sm:$0xf]
        %v251 = vld [vmem:[%s212 + $0x78] sm:$0xf]
        %v252 = vld [vmem:[%s212 + $0x7c] sm:$0xf]
        %v253 = vld [vmem:[%s212 + $0x80] sm:$0xf]
        %v254 = vld [vmem:[%s212 + $0x84] sm:$0xf]
        %v255 = vld [vmem:[%s212 + $0x88] sm:$0xf]
        %v256 = vld [vmem:[%s212 + $0x8c] sm:$0xf]
        %v257 = vld [vmem:[%s212 + $0x90] sm:$0xf]
        %v258 = vld [vmem:[%s212 + $0x94] sm:$0xf]
        %v259 = vld [vmem:[%s212 + $0x98] sm:$0xf]
        %v260 = vld [vmem:[%s212 + $0x9c] sm:$0xf]
        %v261 = vld [vmem:[%s212 + $0xa0] sm:$0xf]
        %v262 = vld [vmem:[%s212 + $0xa4] sm:$0xf]
        %v263 = vld [vmem:[%s212 + $0xa8] sm:$0xf]
        %v264 = vld [vmem:[%s212 + $0xac] sm:$0xf]
        %v265 = vld [vmem:[%s212 + $0xb0] sm:$0xf]
        %v266 = vld [vmem:[%s212 + $0xb4] sm:$0xf]
        %v267 = vld [vmem:[%s212 + $0xb8] sm:$0xf]
        %v268 = vld [vmem:[%s212 + $0xbc] sm:$0xf]
        %v269 = vld [vmem:[%s212 + $0xc0] sm:$0xf]
        %v270 = vld [vmem:[%s212 + $0xc4] sm:$0xf]
        %v271 = vld [vmem:[%s212 + $0xc8] sm:$0xf]
        %v272 = vld [vmem:[%s212 + $0xcc] sm:$0xf]
        %v273 = vld [vmem:[%s212 + $0xd0] sm:$0xf]
        %v274 = vld [vmem:[%s212 + $0xd4] sm:$0xf]
        %v275 = vld [vmem:[%s212 + $0xd8] sm:$0xf]
        %v276 = vld [vmem:[%s212 + $0xdc] sm:$0xf]
        %v277 = vld [vmem:[%s212 + $0xe0] sm:$0xf]
        %v278 = vld [vmem:[%s212 + $0xe4] sm:$0xf]
        %v279 = vld [vmem:[%s212 + $0xe8] sm:$0xf]
        %v280 = vld [vmem:[%s212 + $0xec] sm:$0xf]
        %v281 = vld [vmem:[%s212 + $0xf0] sm:$0xf]
        %v282 = vld [vmem:[%s212 + $0xf4] sm:$0xf]
        %v283 = vld [vmem:[%s212 + $0xf8] sm:$0xf]
        %v284 = vld [vmem:[%s212 + $0xfc] sm:$0xf]
        %v285 = vld [vmem:[%s1] sm:$0xf]
        %v286 = vld [vmem:[%s1 + $0x4] sm:$0xf]
        %v287 = vld [vmem:[%s1 + $0x8] sm:$0xf]
        %v288 = vld [vmem:[%s1 + $0xc] sm:$0xf]
        %v289 = vld [vmem:[%s1 + $0x10] sm:$0xf]
        %v290 = vld [vmem:[%s1 + $0x14] sm:$0xf]
        %v291 = vld [vmem:[%s1 + $0x18] sm:$0xf]
        %v292 = vld [vmem:[%s1 + $0x1c] sm:$0xf]
        %v293 = vld [vmem:[%s1 + $0x20] sm:$0xf]
        %v294 = vld [vmem:[%s1 + $0x24] sm:$0xf]
        %v295 = vld [vmem:[%s1 + $0x28] sm:$0xf]
        %v296 = vld [vmem:[%s1 + $0x2c] sm:$0xf]
        %v297 = vld [vmem:[%s1 + $0x30] sm:$0xf]
        %v298 = vld [vmem:[%s1 + $0x34] sm:$0x3]
        %v363 = vunpack.c.l.b16 %v221
        %v364 = vunpack.c.l.b16 %v222
        %v365 = vunpack.c.l.b16 %v223
        %v366 = vunpack.c.l.b16 %v224
        %v367 = vunpack.c.l.b16 %v225
        %v368 = vunpack.c.l.b16 %v226
        %v369 = vunpack.c.l.b16 %v227
        %v370 = vunpack.c.l.b16 %v228
        %v371 = vunpack.c.l.b16 %v229
        %v372 = vunpack.c.l.b16 %v230
        %v373 = vunpack.c.l.b16 %v231
        %v374 = vunpack.c.l.b16 %v232
        %v375 = vunpack.c.l.b16 %v233
        %v376 = vunpack.c.l.b16 %v234
        %v377 = vunpack.c.l.b16 %v235
        %v378 = vunpack.c.l.b16 %v236
        %v379 = vunpack.c.l.b16 %v237
        %v380 = vunpack.c.l.b16 %v238
        %v381 = vunpack.c.l.b16 %v239
        %v382 = vunpack.c.l.b16 %v240
        %v383 = vunpack.c.l.b16 %v241
        %v384 = vunpack.c.l.b16 %v242
        %v385 = vunpack.c.l.b16 %v243
        %v386 = vunpack.c.l.b16 %v244
        %v387 = vunpack.c.l.b16 %v245
        %v388 = vunpack.c.l.b16 %v246
        %v389 = vunpack.c.l.b16 %v247
        %v390 = vunpack.c.l.b16 %v248
        %v391 = vunpack.c.l.b16 %v249
        %v392 = vunpack.c.l.b16 %v250
        %v393 = vunpack.c.l.b16 %v251
        %v394 = vunpack.c.l.b16 %v252
        %v395 = vunpack.c.l.b16 %v253
        %v396 = vunpack.c.l.b16 %v254
        %v397 = vunpack.c.l.b16 %v255
        %v398 = vunpack.c.l.b16 %v256
        %v399 = vunpack.c.l.b16 %v257
        %v400 = vunpack.c.l.b16 %v258
        %v401 = vunpack.c.l.b16 %v259
        %v402 = vunpack.c.l.b16 %v260
        %v403 = vunpack.c.l.b16 %v261
        %v404 = vunpack.c.l.b16 %v262
        %v405 = vunpack.c.l.b16 %v263
        %v406 = vunpack.c.l.b16 %v264
        %v407 = vunpack.c.l.b16 %v265
        %v408 = vunpack.c.l.b16 %v266
        %v409 = vunpack.c.l.b16 %v267
        %v410 = vunpack.c.l.b16 %v268
        %v411 = vunpack.c.l.b16 %v269
        %v412 = vunpack.c.l.b16 %v270
        %v413 = vunpack.c.l.b16 %v271
        %v414 = vunpack.c.l.b16 %v272
        %v415 = vunpack.c.l.b16 %v273
        %v416 = vunpack.c.l.b16 %v274
        %v417 = vunpack.c.l.b16 %v275
        %v418 = vunpack.c.l.b16 %v276
        %v419 = vunpack.c.l.b16 %v277
        %v420 = vunpack.c.l.b16 %v278
        %v421 = vunpack.c.l.b16 %v279
        %v422 = vunpack.c.l.b16 %v280
        %v423 = vunpack.c.l.b16 %v281
        %v424 = vunpack.c.l.b16 %v282
        %v425 = vunpack.c.l.b16 %v283
        %v426 = vunpack.c.l.b16 %v284
        %v427 = vpack.c.b16 %v364, %v363
        %v428 = vpack.c.b16 %v366, %v365
        %v429 = vpack.c.b16 %v368, %v367
        %v430 = vpack.c.b16 %v370, %v369
        %v431 = vpack.c.b16 %v372, %v371
        %v432 = vpack.c.b16 %v374, %v373
        %v433 = vpack.c.b16 %v376, %v375
        %v434 = vpack.c.b16 %v378, %v377
        %v435 = vpack.c.b16 %v380, %v379
        %v436 = vpack.c.b16 %v382, %v381
        %v437 = vpack.c.b16 %v384, %v383
        %v438 = vpack.c.b16 %v386, %v385
        %v439 = vpack.c.b16 %v388, %v387
        %v440 = vpack.c.b16 %v390, %v389
        %v441 = vpack.c.b16 %v392, %v391
        %v442 = vpack.c.b16 %v394, %v393
        %v443 = vpack.c.b16 %v396, %v395
        %v444 = vpack.c.b16 %v398, %v397
        %v445 = vpack.c.b16 %v400, %v399
        %v446 = vpack.c.b16 %v402, %v401
        %v447 = vpack.c.b16 %v404, %v403
        %v448 = vpack.c.b16 %v406, %v405
        %v449 = vpack.c.b16 %v408, %v407
        %v450 = vpack.c.b16 %v410, %v409
        %v451 = vpack.c.b16 %v412, %v411
        %v452 = vpack.c.b16 %v414, %v413
        %v453 = vpack.c.b16 %v416, %v415
        %v454 = vpack.c.b16 %v418, %v417
        %v455 = vpack.c.b16 %v420, %v419
        %v456 = vpack.c.b16 %v422, %v421
        %v457 = vpack.c.b16 %v424, %v423
        %v458 = vpack.c.b16 %v426, %v425
        %v473 = vunpack.c.l.b16 %v285
        %v474 = vunpack.c.l.b16 %v286
        %v475 = vunpack.c.l.b16 %v287
        %v476 = vunpack.c.l.b16 %v288
        %v477 = vunpack.c.l.b16 %v289
        %v478 = vunpack.c.l.b16 %v290
        %v479 = vunpack.c.l.b16 %v291
        %v480 = vunpack.c.l.b16 %v292
        %v481 = vunpack.c.l.b16 %v293
        %v482 = vunpack.c.l.b16 %v294
        %v483 = vunpack.c.l.b16 %v295
        %v484 = vunpack.c.l.b16 %v296
        %v485 = vunpack.c.l.b16 %v297
        %v486 = vunpack.c.l.b16 %v298
        %v487 = vpack.c.b16 %v474, %v473
        %v488 = vpack.c.b16 %v476, %v475
        %v489 = vpack.c.b16 %v478, %v477
        %v490 = vpack.c.b16 %v480, %v479
        %v491 = vpack.c.b16 %v482, %v481
        %v492 = vpack.c.b16 %v484, %v483
        %v493 = vpack.c.b16 %v486, %v485
        %vm500 = vcmask 883712
        %v502 = vsel %vm500, %v427, 0
        %v505 = vsel %vm500, %v428, 0
        %v508 = vsel %vm500, %v429, 0
        %v511 = vsel %vm500, %v430, 0
        %v514 = vsel %vm500, %v431, 0
        %v517 = vsel %vm500, %v432, 0
        %v520 = vsel %vm500, %v433, 0
        %v523 = vsel %vm500, %v434, 0
        %v526 = vsel %vm500, %v435, 0
        %v529 = vsel %vm500, %v436, 0
        %v532 = vsel %vm500, %v437, 0
        %v535 = vsel %vm500, %v438, 0
        %v538 = vsel %vm500, %v439, 0
        %v541 = vsel %vm500, %v440, 0
        %v544 = vsel %vm500, %v441, 0
        %v547 = vsel %vm500, %v442, 0
        %v550 = vsel %vm500, %v443, 0
        %v553 = vsel %vm500, %v444, 0
        %v556 = vsel %vm500, %v445, 0
        %v559 = vsel %vm500, %v446, 0
        %v562 = vsel %vm500, %v447, 0
        %v565 = vsel %vm500, %v448, 0
        %v568 = vsel %vm500, %v449, 0
        %v571 = vsel %vm500, %v450, 0
        %v574 = vsel %vm500, %v451, 0
        %v577 = vsel %vm500, %v452, 0
        %v580 = vsel %vm500, %v453, 0
        %v583 = vsel %vm500, %v454, 0
        %v586 = vsel %vm500, %v455, 0
        %v589 = vsel %vm500, %v456, 0
        %v592 = vsel %vm500, %v457, 0
        %v595 = vsel %vm500, %v458, 0
        %vm597 = vcmask 1045504
        %v599 = vsel %vm597, %v493, 0
        %601 = vmatpush.bf16.msra.mxu0 0
        %602 = vmatpush.bf16.msra.mxu0 %v599
        %603 = vmatpush.bf16.msra.mxu0 %v492
        %604 = vmatpush.bf16.msra.mxu0 %v491
        %605 = vmatpush.bf16.msra.mxu0 %v490
        %606 = vmatpush.bf16.msra.mxu0 %v489
        %607 = vmatpush.bf16.msra.mxu0 %v488
        %608 = vmatpush.bf16.msra.mxu0 %v487
        %609 = vmatmul.bf16.gmra.mxu0 %v502
        %v610 = vpop.f32.mrf.mxu0
        %v611 = vadd.f32 0.0, %v610
        %v612 = vpop.f32.mrf.mxu0
        %v613 = vadd.f32 0.0, %v612
        %614 = vmatmul.bf16.gmra.mxu0 %v505
        %v615 = vpop.f32.mrf.mxu0
        %v616 = vadd.f32 0.0, %v615
        %v617 = vpop.f32.mrf.mxu0
        %v618 = vadd.f32 0.0, %v617
        %619 = vmatmul.bf16.gmra.mxu0 %v508
        %v620 = vpop.f32.mrf.mxu0
        %v621 = vadd.f32 0.0, %v620
        %v622 = vpop.f32.mrf.mxu0
        %v623 = vadd.f32 0.0, %v622
        %624 = vmatmul.bf16.gmra.mxu0 %v511
        %v625 = vpop.f32.mrf.mxu0
        %v626 = vadd.f32 0.0, %v625
        %v627 = vpop.f32.mrf.mxu0
        %v628 = vadd.f32 0.0, %v627
        %629 = vmatmul.bf16.gmra.mxu0 %v514
        %v630 = vpop.f32.mrf.mxu0
        %v631 = vadd.f32 0.0, %v630
        %v632 = vpop.f32.mrf.mxu0
        %v633 = vadd.f32 0.0, %v632
        %634 = vmatmul.bf16.gmra.mxu0 %v517
        %v635 = vpop.f32.mrf.mxu0
        %v636 = vadd.f32 0.0, %v635
        %v637 = vpop.f32.mrf.mxu0
        %v638 = vadd.f32 0.0, %v637
        %639 = vmatmul.bf16.gmra.mxu0 %v520
        %v640 = vpop.f32.mrf.mxu0
        %v641 = vadd.f32 0.0, %v640
        %v642 = vpop.f32.mrf.mxu0
        %v643 = vadd.f32 0.0, %v642
        %644 = vmatmul.bf16.gmra.mxu0 %v523
        %v645 = vpop.f32.mrf.mxu0
        %v646 = vadd.f32 0.0, %v645
        %v647 = vpop.f32.mrf.mxu0
        %v648 = vadd.f32 0.0, %v647
        %649 = vmatmul.bf16.gmra.mxu0 %v526
        %v650 = vpop.f32.mrf.mxu0
        %v651 = vadd.f32 0.0, %v650
        %v652 = vpop.f32.mrf.mxu0
        %v653 = vadd.f32 0.0, %v652
        %654 = vmatmul.bf16.gmra.mxu0 %v529
        %v655 = vpop.f32.mrf.mxu0
        %v656 = vadd.f32 0.0, %v655
        %v657 = vpop.f32.mrf.mxu0
        %v658 = vadd.f32 0.0, %v657
        %659 = vmatmul.bf16.gmra.mxu0 %v532
        %v660 = vpop.f32.mrf.mxu0
        %v661 = vadd.f32 0.0, %v660
        %v662 = vpop.f32.mrf.mxu0
        %v663 = vadd.f32 0.0, %v662
        %664 = vmatmul.bf16.gmra.mxu0 %v535
        %v665 = vpop.f32.mrf.mxu0
        %v666 = vadd.f32 0.0, %v665
        %v667 = vpop.f32.mrf.mxu0
        %v668 = vadd.f32 0.0, %v667
        %669 = vmatmul.bf16.gmra.mxu0 %v538
        %v670 = vpop.f32.mrf.mxu0
        %v671 = vadd.f32 0.0, %v670
        %v672 = vpop.f32.mrf.mxu0
        %v673 = vadd.f32 0.0, %v672
        %674 = vmatmul.bf16.gmra.mxu0 %v541
        %v675 = vpop.f32.mrf.mxu0
        %v676 = vadd.f32 0.0, %v675
        %v677 = vpop.f32.mrf.mxu0
        %v678 = vadd.f32 0.0, %v677
        %679 = vmatmul.bf16.gmra.mxu0 %v544
        %v680 = vpop.f32.mrf.mxu0
        %v681 = vadd.f32 0.0, %v680
        %v682 = vpop.f32.mrf.mxu0
        %v683 = vadd.f32 0.0, %v682
        %684 = vmatmul.bf16.gmra.mxu0 %v547
        %v685 = vpop.f32.mrf.mxu0
        %v686 = vadd.f32 0.0, %v685
        %v687 = vpop.f32.mrf.mxu0
        %v688 = vadd.f32 0.0, %v687
        %689 = vmatmul.bf16.gmra.mxu0 %v550
        %v690 = vpop.f32.mrf.mxu0
        %v691 = vadd.f32 0.0, %v690
        %v692 = vpop.f32.mrf.mxu0
        %v693 = vadd.f32 0.0, %v692
        %694 = vmatmul.bf16.gmra.mxu0 %v553
        %v695 = vpop.f32.mrf.mxu0
        %v696 = vadd.f32 0.0, %v695
        %v697 = vpop.f32.mrf.mxu0
        %v698 = vadd.f32 0.0, %v697
        %699 = vmatmul.bf16.gmra.mxu0 %v556
        %v700 = vpop.f32.mrf.mxu0
        %v701 = vadd.f32 0.0, %v700
        %v702 = vpop.f32.mrf.mxu0
        %v703 = vadd.f32 0.0, %v702
        %704 = vmatmul.bf16.gmra.mxu0 %v559
        %v705 = vpop.f32.mrf.mxu0
        %v706 = vadd.f32 0.0, %v705
        %v707 = vpop.f32.mrf.mxu0
        %v708 = vadd.f32 0.0, %v707
        %709 = vmatmul.bf16.gmra.mxu0 %v562
        %v710 = vpop.f32.mrf.mxu0
        %v711 = vadd.f32 0.0, %v710
        %v712 = vpop.f32.mrf.mxu0
        %v713 = vadd.f32 0.0, %v712
        %714 = vmatmul.bf16.gmra.mxu0 %v565
        %v715 = vpop.f32.mrf.mxu0
        %v716 = vadd.f32 0.0, %v715
        %v717 = vpop.f32.mrf.mxu0
        %v718 = vadd.f32 0.0, %v717
        %719 = vmatmul.bf16.gmra.mxu0 %v568
        %v720 = vpop.f32.mrf.mxu0
        %v721 = vadd.f32 0.0, %v720
        %v722 = vpop.f32.mrf.mxu0
        %v723 = vadd.f32 0.0, %v722
        %724 = vmatmul.bf16.gmra.mxu0 %v571
        %v725 = vpop.f32.mrf.mxu0
        %v726 = vadd.f32 0.0, %v725
        %v727 = vpop.f32.mrf.mxu0
        %v728 = vadd.f32 0.0, %v727
        %729 = vmatmul.bf16.gmra.mxu0 %v574
        %v730 = vpop.f32.mrf.mxu0
        %v731 = vadd.f32 0.0, %v730
        %v732 = vpop.f32.mrf.mxu0
        %v733 = vadd.f32 0.0, %v732
        %734 = vmatmul.bf16.gmra.mxu0 %v577
        %v735 = vpop.f32.mrf.mxu0
        %v736 = vadd.f32 0.0, %v735
        %v737 = vpop.f32.mrf.mxu0
        %v738 = vadd.f32 0.0, %v737
        %739 = vmatmul.bf16.gmra.mxu0 %v580
        %v740 = vpop.f32.mrf.mxu0
        %v741 = vadd.f32 0.0, %v740
        %v742 = vpop.f32.mrf.mxu0
        %v743 = vadd.f32 0.0, %v742
        %744 = vmatmul.bf16.gmra.mxu0 %v583
        %v745 = vpop.f32.mrf.mxu0
        %v746 = vadd.f32 0.0, %v745
        %v747 = vpop.f32.mrf.mxu0
        %v748 = vadd.f32 0.0, %v747
        %749 = vmatmul.bf16.gmra.mxu0 %v586
        %v750 = vpop.f32.mrf.mxu0
        %v751 = vadd.f32 0.0, %v750
        %v752 = vpop.f32.mrf.mxu0
        %v753 = vadd.f32 0.0, %v752
        %754 = vmatmul.bf16.gmra.mxu0 %v589
        %v755 = vpop.f32.mrf.mxu0
        %v756 = vadd.f32 0.0, %v755
        %v757 = vpop.f32.mrf.mxu0
        %v758 = vadd.f32 0.0, %v757
        %759 = vmatmul.bf16.gmra.mxu0 %v592
        %v760 = vpop.f32.mrf.mxu0
        %v761 = vadd.f32 0.0, %v760
        %v762 = vpop.f32.mrf.mxu0
        %v763 = vadd.f32 0.0, %v762
        %764 = vmatmul.bf16.gmra.mxu0 %v595
        %v765 = vpop.f32.mrf.mxu0
        %v766 = vadd.f32 0.0, %v765
        %v767 = vpop.f32.mrf.mxu0
        %v768 = vadd.f32 0.0, %v767
        %769 = vdwg.mxu0
        %v770 = vpack.c.bf16 %v611, %v611
        %v771 = vpack.c.bf16 %v613, %v613
        %v772 = vpack.c.bf16 %v616, %v616
        %v773 = vpack.c.bf16 %v618, %v618
        %v774 = vpack.c.bf16 %v621, %v621
        %v775 = vpack.c.bf16 %v623, %v623
        %v776 = vpack.c.bf16 %v626, %v626
        %v777 = vpack.c.bf16 %v628, %v628
        %v778 = vpack.c.bf16 %v631, %v631
        %v779 = vpack.c.bf16 %v633, %v633
        %v780 = vpack.c.bf16 %v636, %v636
        %v781 = vpack.c.bf16 %v638, %v638
        %v782 = vpack.c.bf16 %v641, %v641
        %v783 = vpack.c.bf16 %v643, %v643
        %v784 = vpack.c.bf16 %v646, %v646
        %v785 = vpack.c.bf16 %v648, %v648
        %v786 = vpack.c.bf16 %v651, %v651
        %v787 = vpack.c.bf16 %v653, %v653
        %v788 = vpack.c.bf16 %v656, %v656
        %v789 = vpack.c.bf16 %v658, %v658
        %v790 = vpack.c.bf16 %v661, %v661
        %v791 = vpack.c.bf16 %v663, %v663
        %v792 = vpack.c.bf16 %v666, %v666
        %v793 = vpack.c.bf16 %v668, %v668
        %v794 = vpack.c.bf16 %v671, %v671
        %v795 = vpack.c.bf16 %v673, %v673
        %v796 = vpack.c.bf16 %v676, %v676
        %v797 = vpack.c.bf16 %v678, %v678
        %v798 = vpack.c.bf16 %v681, %v681
        %v799 = vpack.c.bf16 %v683, %v683
        %v800 = vpack.c.bf16 %v686, %v686
        %v801 = vpack.c.bf16 %v688, %v688
        %v802 = vpack.c.bf16 %v691, %v691
        %v803 = vpack.c.bf16 %v693, %v693
        %v804 = vpack.c.bf16 %v696, %v696
        %v805 = vpack.c.bf16 %v698, %v698
        %v806 = vpack.c.bf16 %v701, %v701
        %v807 = vpack.c.bf16 %v703, %v703
        %v808 = vpack.c.bf16 %v706, %v706
        %v809 = vpack.c.bf16 %v708, %v708
        %v810 = vpack.c.bf16 %v711, %v711
        %v811 = vpack.c.bf16 %v713, %v713
        %v812 = vpack.c.bf16 %v716, %v716
        %v813 = vpack.c.bf16 %v718, %v718
        %v814 = vpack.c.bf16 %v721, %v721
        %v815 = vpack.c.bf16 %v723, %v723
        %v816 = vpack.c.bf16 %v726, %v726
        %v817 = vpack.c.bf16 %v728, %v728
        %v818 = vpack.c.bf16 %v731, %v731
        %v819 = vpack.c.bf16 %v733, %v733
        %v820 = vpack.c.bf16 %v736, %v736
        %v821 = vpack.c.bf16 %v738, %v738
        %v822 = vpack.c.bf16 %v741, %v741
        %v823 = vpack.c.bf16 %v743, %v743
        %v824 = vpack.c.bf16 %v746, %v746
        %v825 = vpack.c.bf16 %v748, %v748
        %v826 = vpack.c.bf16 %v751, %v751
        %v827 = vpack.c.bf16 %v753, %v753
        %v828 = vpack.c.bf16 %v756, %v756
        %v829 = vpack.c.bf16 %v758, %v758
        %v830 = vpack.c.bf16 %v761, %v761
        %v831 = vpack.c.bf16 %v763, %v763
        %v832 = vpack.c.bf16 %v766, %v766
        %v833 = vpack.c.bf16 %v768, %v768
        %vm834 = vcmask 257024
        %835 = vst.msk [vmem:[%s218] sm:$0xf] %vm834, %v770
        %836 = vst.msk [vmem:[%s218 + $0x4] sm:$0xf] %vm834, %v771
        %837 = vst.msk [vmem:[%s218 + $0x8] sm:$0xf] %vm834, %v772
        %838 = vst.msk [vmem:[%s218 + $0xc] sm:$0xf] %vm834, %v773
        %839 = vst.msk [vmem:[%s218 + $0x10] sm:$0xf] %vm834, %v774
        %840 = vst.msk [vmem:[%s218 + $0x14] sm:$0xf] %vm834, %v775
        %841 = vst.msk [vmem:[%s218 + $0x18] sm:$0xf] %vm834, %v776
        %842 = vst.msk [vmem:[%s218 + $0x1c] sm:$0xf] %vm834, %v777
        %843 = vst.msk [vmem:[%s218 + $0x20] sm:$0xf] %vm834, %v778
        %844 = vst.msk [vmem:[%s218 + $0x24] sm:$0xf] %vm834, %v779
        %845 = vst.msk [vmem:[%s218 + $0x28] sm:$0xf] %vm834, %v780
        %846 = vst.msk [vmem:[%s218 + $0x2c] sm:$0xf] %vm834, %v781
        %847 = vst.msk [vmem:[%s218 + $0x30] sm:$0xf] %vm834, %v782
        %848 = vst.msk [vmem:[%s218 + $0x34] sm:$0xf] %vm834, %v783
        %849 = vst.msk [vmem:[%s218 + $0x38] sm:$0xf] %vm834, %v784
        %850 = vst.msk [vmem:[%s218 + $0x3c] sm:$0xf] %vm834, %v785
        %851 = vst.msk [vmem:[%s218 + $0x40] sm:$0xf] %vm834, %v786
        %852 = vst.msk [vmem:[%s218 + $0x44] sm:$0xf] %vm834, %v787
        %853 = vst.msk [vmem:[%s218 + $0x48] sm:$0xf] %vm834, %v788
        %854 = vst.msk [vmem:[%s218 + $0x4c] sm:$0xf] %vm834, %v789
        %855 = vst.msk [vmem:[%s218 + $0x50] sm:$0xf] %vm834, %v790
        %856 = vst.msk [vmem:[%s218 + $0x54] sm:$0xf] %vm834, %v791
        %857 = vst.msk [vmem:[%s218 + $0x58] sm:$0xf] %vm834, %v792
        %858 = vst.msk [vmem:[%s218 + $0x5c] sm:$0xf] %vm834, %v793
        %859 = vst.msk [vmem:[%s218 + $0x60] sm:$0xf] %vm834, %v794
        %860 = vst.msk [vmem:[%s218 + $0x64] sm:$0xf] %vm834, %v795
        %861 = vst.msk [vmem:[%s218 + $0x68] sm:$0xf] %vm834, %v796
        %862 = vst.msk [vmem:[%s218 + $0x6c] sm:$0xf] %vm834, %v797
        %863 = vst.msk [vmem:[%s218 + $0x70] sm:$0xf] %vm834, %v798
        %864 = vst.msk [vmem:[%s218 + $0x74] sm:$0xf] %vm834, %v799
        %865 = vst.msk [vmem:[%s218 + $0x78] sm:$0xf] %vm834, %v800
        %866 = vst.msk [vmem:[%s218 + $0x7c] sm:$0xf] %vm834, %v801
        %867 = vst.msk [vmem:[%s218 + $0x80] sm:$0xf] %vm834, %v802
        %868 = vst.msk [vmem:[%s218 + $0x84] sm:$0xf] %vm834, %v803
        %869 = vst.msk [vmem:[%s218 + $0x88] sm:$0xf] %vm834, %v804
        %870 = vst.msk [vmem:[%s218 + $0x8c] sm:$0xf] %vm834, %v805
        %871 = vst.msk [vmem:[%s218 + $0x90] sm:$0xf] %vm834, %v806
        %872 = vst.msk [vmem:[%s218 + $0x94] sm:$0xf] %vm834, %v807
        %873 = vst.msk [vmem:[%s218 + $0x98] sm:$0xf] %vm834, %v808
        %874 = vst.msk [vmem:[%s218 + $0x9c] sm:$0xf] %vm834, %v809
        %875 = vst.msk [vmem:[%s218 + $0xa0] sm:$0xf] %vm834, %v810
        %876 = vst.msk [vmem:[%s218 + $0xa4] sm:$0xf] %vm834, %v811
        %877 = vst.msk [vmem:[%s218 + $0xa8] sm:$0xf] %vm834, %v812
        %878 = vst.msk [vmem:[%s218 + $0xac] sm:$0xf] %vm834, %v813
        %879 = vst.msk [vmem:[%s218 + $0xb0] sm:$0xf] %vm834, %v814
        %880 = vst.msk [vmem:[%s218 + $0xb4] sm:$0xf] %vm834, %v815
        %881 = vst.msk [vmem:[%s218 + $0xb8] sm:$0xf] %vm834, %v816
        %882 = vst.msk [vmem:[%s218 + $0xbc] sm:$0xf] %vm834, %v817
        %883 = vst.msk [vmem:[%s218 + $0xc0] sm:$0xf] %vm834, %v818
        %884 = vst.msk [vmem:[%s218 + $0xc4] sm:$0xf] %vm834, %v819
        %885 = vst.msk [vmem:[%s218 + $0xc8] sm:$0xf] %vm834, %v820
        %886 = vst.msk [vmem:[%s218 + $0xcc] sm:$0xf] %vm834, %v821
        %887 = vst.msk [vmem:[%s218 + $0xd0] sm:$0xf] %vm834, %v822
        %888 = vst.msk [vmem:[%s218 + $0xd4] sm:$0xf] %vm834, %v823
        %889 = vst.msk [vmem:[%s218 + $0xd8] sm:$0xf] %vm834, %v824
        %890 = vst.msk [vmem:[%s218 + $0xdc] sm:$0xf] %vm834, %v825
        %891 = vst.msk [vmem:[%s218 + $0xe0] sm:$0xf] %vm834, %v826
        %892 = vst.msk [vmem:[%s218 + $0xe4] sm:$0xf] %vm834, %v827
        %893 = vst.msk [vmem:[%s218 + $0xe8] sm:$0xf] %vm834, %v828
        %894 = vst.msk [vmem:[%s218 + $0xec] sm:$0xf] %vm834, %v829
        %895 = vst.msk [vmem:[%s218 + $0xf0] sm:$0xf] %vm834, %v830
        %896 = vst.msk [vmem:[%s218 + $0xf4] sm:$0xf] %vm834, %v831
        %897 = vst.msk [vmem:[%s218 + $0xf8] sm:$0xf] %vm834, %v832
        %898 = vst.msk [vmem:[%s218 + $0xfc] sm:$0xf] %vm834, %v833
        %vm899 = vcmask 261120
        %v900 = vsel %vm899, %v611, 0.0
        %v901 = vsel %vm899, %v613, 0.0
        %v902 = vadd.f32 %v900, %v901
        %v903 = vsel %vm899, %v616, 0.0
        %v904 = vadd.f32 %v902, %v903
        %v905 = vsel %vm899, %v618, 0.0
        %v906 = vadd.f32 %v904, %v905
        %v907 = vsel %vm899, %v621, 0.0
        %v908 = vadd.f32 %v906, %v907
        %v909 = vsel %vm899, %v623, 0.0
        %v910 = vadd.f32 %v908, %v909
        %v911 = vsel %vm899, %v626, 0.0
        %v912 = vadd.f32 %v910, %v911
        %v913 = vsel %vm899, %v628, 0.0
        %v914 = vadd.f32 %v912, %v913
        %v915 = vsel %vm899, %v631, 0.0
        %v916 = vadd.f32 %v914, %v915
        %v917 = vsel %vm899, %v633, 0.0
        %v918 = vadd.f32 %v916, %v917
        %v919 = vsel %vm899, %v636, 0.0
        %v920 = vadd.f32 %v918, %v919
        %v921 = vsel %vm899, %v638, 0.0
        %v922 = vadd.f32 %v920, %v921
        %v923 = vsel %vm899, %v641, 0.0
        %v924 = vadd.f32 %v922, %v923
        %v925 = vsel %vm899, %v643, 0.0
        %v926 = vadd.f32 %v924, %v925
        %v927 = vsel %vm899, %v646, 0.0
        %v928 = vadd.f32 %v926, %v927
        %v929 = vsel %vm899, %v648, 0.0
        %v930 = vadd.f32 %v928, %v929
        %v931 = vsel %vm899, %v651, 0.0
        %v932 = vadd.f32 %v930, %v931
        %v933 = vsel %vm899, %v653, 0.0
        %v934 = vadd.f32 %v932, %v933
        %v935 = vsel %vm899, %v656, 0.0
        %v936 = vadd.f32 %v934, %v935
        %v937 = vsel %vm899, %v658, 0.0
        %v938 = vadd.f32 %v936, %v937
        %v939 = vsel %vm899, %v661, 0.0
        %v940 = vadd.f32 %v938, %v939
        %v941 = vsel %vm899, %v663, 0.0
        %v942 = vadd.f32 %v940, %v941
        %v943 = vsel %vm899, %v666, 0.0
        %v944 = vadd.f32 %v942, %v943
        %v945 = vsel %vm899, %v668, 0.0
        %v946 = vadd.f32 %v944, %v945
        %v947 = vsel %vm899, %v671, 0.0
        %v948 = vadd.f32 %v946, %v947
        %v949 = vsel %vm899, %v673, 0.0
        %v950 = vadd.f32 %v948, %v949
        %v951 = vsel %vm899, %v676, 0.0
        %v952 = vadd.f32 %v950, %v951
        %v953 = vsel %vm899, %v678, 0.0
        %v954 = vadd.f32 %v952, %v953
        %v955 = vsel %vm899, %v681, 0.0
        %v956 = vadd.f32 %v954, %v955
        %v957 = vsel %vm899, %v683, 0.0
        %v958 = vadd.f32 %v956, %v957
        %v959 = vsel %vm899, %v686, 0.0
        %v960 = vadd.f32 %v958, %v959
        %v961 = vsel %vm899, %v688, 0.0
        %v962 = vadd.f32 %v960, %v961
        %v963 = vsel %vm899, %v691, 0.0
        %v964 = vadd.f32 %v962, %v963
        %v965 = vsel %vm899, %v693, 0.0
        %v966 = vadd.f32 %v964, %v965
        %v967 = vsel %vm899, %v696, 0.0
        %v968 = vadd.f32 %v966, %v967
        %v969 = vsel %vm899, %v698, 0.0
        %v970 = vadd.f32 %v968, %v969
        %v971 = vsel %vm899, %v701, 0.0
        %v972 = vadd.f32 %v970, %v971
        %v973 = vsel %vm899, %v703, 0.0
        %v974 = vadd.f32 %v972, %v973
        %v975 = vsel %vm899, %v706, 0.0
        %v976 = vadd.f32 %v974, %v975
        %v977 = vsel %vm899, %v708, 0.0
        %v978 = vadd.f32 %v976, %v977
        %v979 = vsel %vm899, %v711, 0.0
        %v980 = vadd.f32 %v978, %v979
        %v981 = vsel %vm899, %v713, 0.0
        %v982 = vadd.f32 %v980, %v981
        %v983 = vsel %vm899, %v716, 0.0
        %v984 = vadd.f32 %v982, %v983
        %v985 = vsel %vm899, %v718, 0.0
        %v986 = vadd.f32 %v984, %v985
        %v987 = vsel %vm899, %v721, 0.0
        %v988 = vadd.f32 %v986, %v987
        %v989 = vsel %vm899, %v723, 0.0
        %v990 = vadd.f32 %v988, %v989
        %v991 = vsel %vm899, %v726, 0.0
        %v992 = vadd.f32 %v990, %v991
        %v993 = vsel %vm899, %v728, 0.0
        %v994 = vadd.f32 %v992, %v993
        %v995 = vsel %vm899, %v731, 0.0
        %v996 = vadd.f32 %v994, %v995
        %v997 = vsel %vm899, %v733, 0.0
        %v998 = vadd.f32 %v996, %v997
        %v999 = vsel %vm899, %v736, 0.0
        %v1000 = vadd.f32 %v998, %v999
        %v1001 = vsel %vm899, %v738, 0.0
        %v1002 = vadd.f32 %v1000, %v1001
        %v1003 = vsel %vm899, %v741, 0.0
        %v1004 = vadd.f32 %v1002, %v1003
        %v1005 = vsel %vm899, %v743, 0.0
        %v1006 = vadd.f32 %v1004, %v1005
        %v1007 = vsel %vm899, %v746, 0.0
        %v1008 = vadd.f32 %v1006, %v1007
        %v1009 = vsel %vm899, %v748, 0.0
        %v1010 = vadd.f32 %v1008, %v1009
        %v1011 = vsel %vm899, %v751, 0.0
        %v1012 = vadd.f32 %v1010, %v1011
        %v1013 = vsel %vm899, %v753, 0.0
        %v1014 = vadd.f32 %v1012, %v1013
        %v1015 = vsel %vm899, %v756, 0.0
        %v1016 = vadd.f32 %v1014, %v1015
        %v1017 = vsel %vm899, %v758, 0.0
        %v1018 = vadd.f32 %v1016, %v1017
        %v1019 = vsel %vm899, %v761, 0.0
        %v1020 = vadd.f32 %v1018, %v1019
        %v1021 = vsel %vm899, %v763, 0.0
        %v1022 = vadd.f32 %v1020, %v1021
        %v1023 = vsel %vm899, %v766, 0.0
        %v1024 = vadd.f32 %v1022, %v1023
        %v1025 = vsel %vm899, %v768, 0.0
        %v1026 = vadd.f32 %v1024, %v1025
        %v1027 = vrot.slane %v1026, 4
        %v1028 = vadd.f32 %v1026, %v1027
        %v1029 = vrot.slane %v1028, 2
        %v1030 = vadd.f32 %v1028, %v1029
        %v1031 = vrot.slane %v1030, 1
        %v1032 = vadd.f32 %v1030, %v1031
        %vm1033 = vcmask 253952
        %1034 = vst.msk [vmem:[%s201] sm:$0x1] %vm1033, %v1032
        %v1035 = vmul.f32 %v611, %v611
        %v1036 = vmul.f32 %v613, %v613
        %v1037 = vmul.f32 %v616, %v616
        %v1038 = vmul.f32 %v618, %v618
        %v1039 = vmul.f32 %v621, %v621
        %v1040 = vmul.f32 %v623, %v623
        %v1041 = vmul.f32 %v626, %v626
        %v1042 = vmul.f32 %v628, %v628
        %v1043 = vmul.f32 %v631, %v631
        %v1044 = vmul.f32 %v633, %v633
        %v1045 = vmul.f32 %v636, %v636
        %v1046 = vmul.f32 %v638, %v638
        %v1047 = vmul.f32 %v641, %v641
        %v1048 = vmul.f32 %v643, %v643
        %v1049 = vmul.f32 %v646, %v646
        %v1050 = vmul.f32 %v648, %v648
        %v1051 = vmul.f32 %v651, %v651
        %v1052 = vmul.f32 %v653, %v653
        %v1053 = vmul.f32 %v656, %v656
        %v1054 = vmul.f32 %v658, %v658
        %v1055 = vmul.f32 %v661, %v661
        %v1056 = vmul.f32 %v663, %v663
        %v1057 = vmul.f32 %v666, %v666
        %v1058 = vmul.f32 %v668, %v668
        %v1059 = vmul.f32 %v671, %v671
        %v1060 = vmul.f32 %v673, %v673
        %v1061 = vmul.f32 %v676, %v676
        %v1062 = vmul.f32 %v678, %v678
        %v1063 = vmul.f32 %v681, %v681
        %v1064 = vmul.f32 %v683, %v683
        %v1065 = vmul.f32 %v686, %v686
        %v1066 = vmul.f32 %v688, %v688
        %v1067 = vmul.f32 %v691, %v691
        %v1068 = vmul.f32 %v693, %v693
        %v1069 = vmul.f32 %v696, %v696
        %v1070 = vmul.f32 %v698, %v698
        %v1071 = vmul.f32 %v701, %v701
        %v1072 = vmul.f32 %v703, %v703
        %v1073 = vmul.f32 %v706, %v706
        %v1074 = vmul.f32 %v708, %v708
        %v1075 = vmul.f32 %v711, %v711
        %v1076 = vmul.f32 %v713, %v713
        %v1077 = vmul.f32 %v716, %v716
        %v1078 = vmul.f32 %v718, %v718
        %v1079 = vmul.f32 %v721, %v721
        %v1080 = vmul.f32 %v723, %v723
        %v1081 = vmul.f32 %v726, %v726
        %v1082 = vmul.f32 %v728, %v728
        %v1083 = vmul.f32 %v731, %v731
        %v1084 = vmul.f32 %v733, %v733
        %v1085 = vmul.f32 %v736, %v736
        %v1086 = vmul.f32 %v738, %v738
        %v1087 = vmul.f32 %v741, %v741
        %v1088 = vmul.f32 %v743, %v743
        %v1089 = vmul.f32 %v746, %v746
        %v1090 = vmul.f32 %v748, %v748
        %v1091 = vmul.f32 %v751, %v751
        %v1092 = vmul.f32 %v753, %v753
        %v1093 = vmul.f32 %v756, %v756
        %v1094 = vmul.f32 %v758, %v758
        %v1095 = vmul.f32 %v761, %v761
        %v1096 = vmul.f32 %v763, %v763
        %v1097 = vmul.f32 %v766, %v766
        %v1098 = vmul.f32 %v768, %v768
        %v1099 = vsel %vm899, %v1035, 0.0
        %v1100 = vsel %vm899, %v1036, 0.0
        %v1101 = vadd.f32 %v1099, %v1100
        %v1102 = vsel %vm899, %v1037, 0.0
        %v1103 = vadd.f32 %v1101, %v1102
        %v1104 = vsel %vm899, %v1038, 0.0
        %v1105 = vadd.f32 %v1103, %v1104
        %v1106 = vsel %vm899, %v1039, 0.0
        %v1107 = vadd.f32 %v1105, %v1106
        %v1108 = vsel %vm899, %v1040, 0.0
        %v1109 = vadd.f32 %v1107, %v1108
        %v1110 = vsel %vm899, %v1041, 0.0
        %v1111 = vadd.f32 %v1109, %v1110
        %v1112 = vsel %vm899, %v1042, 0.0
        %v1113 = vadd.f32 %v1111, %v1112
        %v1114 = vsel %vm899, %v1043, 0.0
        %v1115 = vadd.f32 %v1113, %v1114
        %v1116 = vsel %vm899, %v1044, 0.0
        %v1117 = vadd.f32 %v1115, %v1116
        %v1118 = vsel %vm899, %v1045, 0.0
        %v1119 = vadd.f32 %v1117, %v1118
        %v1120 = vsel %vm899, %v1046, 0.0
        %v1121 = vadd.f32 %v1119, %v1120
        %v1122 = vsel %vm899, %v1047, 0.0
        %v1123 = vadd.f32 %v1121, %v1122
        %v1124 = vsel %vm899, %v1048, 0.0
        %v1125 = vadd.f32 %v1123, %v1124
        %v1126 = vsel %vm899, %v1049, 0.0
        %v1127 = vadd.f32 %v1125, %v1126
        %v1128 = vsel %vm899, %v1050, 0.0
        %v1129 = vadd.f32 %v1127, %v1128
        %v1130 = vsel %vm899, %v1051, 0.0
        %v1131 = vadd.f32 %v1129, %v1130
        %v1132 = vsel %vm899, %v1052, 0.0
        %v1133 = vadd.f32 %v1131, %v1132
        %v1134 = vsel %vm899, %v1053, 0.0
        %v1135 = vadd.f32 %v1133, %v1134
        %v1136 = vsel %vm899, %v1054, 0.0
        %v1137 = vadd.f32 %v1135, %v1136
        %v1138 = vsel %vm899, %v1055, 0.0
        %v1139 = vadd.f32 %v1137, %v1138
        %v1140 = vsel %vm899, %v1056, 0.0
        %v1141 = vadd.f32 %v1139, %v1140
        %v1142 = vsel %vm899, %v1057, 0.0
        %v1143 = vadd.f32 %v1141, %v1142
        %v1144 = vsel %vm899, %v1058, 0.0
        %v1145 = vadd.f32 %v1143, %v1144
        %v1146 = vsel %vm899, %v1059, 0.0
        %v1147 = vadd.f32 %v1145, %v1146
        %v1148 = vsel %vm899, %v1060, 0.0
        %v1149 = vadd.f32 %v1147, %v1148
        %v1150 = vsel %vm899, %v1061, 0.0
        %v1151 = vadd.f32 %v1149, %v1150
        %v1152 = vsel %vm899, %v1062, 0.0
        %v1153 = vadd.f32 %v1151, %v1152
        %v1154 = vsel %vm899, %v1063, 0.0
        %v1155 = vadd.f32 %v1153, %v1154
        %v1156 = vsel %vm899, %v1064, 0.0
        %v1157 = vadd.f32 %v1155, %v1156
        %v1158 = vsel %vm899, %v1065, 0.0
        %v1159 = vadd.f32 %v1157, %v1158
        %v1160 = vsel %vm899, %v1066, 0.0
        %v1161 = vadd.f32 %v1159, %v1160
        %v1162 = vsel %vm899, %v1067, 0.0
        %v1163 = vadd.f32 %v1161, %v1162
        %v1164 = vsel %vm899, %v1068, 0.0
        %v1165 = vadd.f32 %v1163, %v1164
        %v1166 = vsel %vm899, %v1069, 0.0
        %v1167 = vadd.f32 %v1165, %v1166
        %v1168 = vsel %vm899, %v1070, 0.0
        %v1169 = vadd.f32 %v1167, %v1168
        %v1170 = vsel %vm899, %v1071, 0.0
        %v1171 = vadd.f32 %v1169, %v1170
        %v1172 = vsel %vm899, %v1072, 0.0
        %v1173 = vadd.f32 %v1171, %v1172
        %v1174 = vsel %vm899, %v1073, 0.0
        %v1175 = vadd.f32 %v1173, %v1174
        %v1176 = vsel %vm899, %v1074, 0.0
        %v1177 = vadd.f32 %v1175, %v1176
        %v1178 = vsel %vm899, %v1075, 0.0
        %v1179 = vadd.f32 %v1177, %v1178
        %v1180 = vsel %vm899, %v1076, 0.0
        %v1181 = vadd.f32 %v1179, %v1180
        %v1182 = vsel %vm899, %v1077, 0.0
        %v1183 = vadd.f32 %v1181, %v1182
        %v1184 = vsel %vm899, %v1078, 0.0
        %v1185 = vadd.f32 %v1183, %v1184
        %v1186 = vsel %vm899, %v1079, 0.0
        %v1187 = vadd.f32 %v1185, %v1186
        %v1188 = vsel %vm899, %v1080, 0.0
        %v1189 = vadd.f32 %v1187, %v1188
        %v1190 = vsel %vm899, %v1081, 0.0
        %v1191 = vadd.f32 %v1189, %v1190
        %v1192 = vsel %vm899, %v1082, 0.0
        %v1193 = vadd.f32 %v1191, %v1192
        %v1194 = vsel %vm899, %v1083, 0.0
        %v1195 = vadd.f32 %v1193, %v1194
        %v1196 = vsel %vm899, %v1084, 0.0
        %v1197 = vadd.f32 %v1195, %v1196
        %v1198 = vsel %vm899, %v1085, 0.0
        %v1199 = vadd.f32 %v1197, %v1198
        %v1200 = vsel %vm899, %v1086, 0.0
        %v1201 = vadd.f32 %v1199, %v1200
        %v1202 = vsel %vm899, %v1087, 0.0
        %v1203 = vadd.f32 %v1201, %v1202
        %v1204 = vsel %vm899, %v1088, 0.0
        %v1205 = vadd.f32 %v1203, %v1204
        %v1206 = vsel %vm899, %v1089, 0.0
        %v1207 = vadd.f32 %v1205, %v1206
        %v1208 = vsel %vm899, %v1090, 0.0
        %v1209 = vadd.f32 %v1207, %v1208
        %v1210 = vsel %vm899, %v1091, 0.0
        %v1211 = vadd.f32 %v1209, %v1210
        %v1212 = vsel %vm899, %v1092, 0.0
        %v1213 = vadd.f32 %v1211, %v1212
        %v1214 = vsel %vm899, %v1093, 0.0
        %v1215 = vadd.f32 %v1213, %v1214
        %v1216 = vsel %vm899, %v1094, 0.0
        %v1217 = vadd.f32 %v1215, %v1216
        %v1218 = vsel %vm899, %v1095, 0.0
        %v1219 = vadd.f32 %v1217, %v1218
        %v1220 = vsel %vm899, %v1096, 0.0
        %v1221 = vadd.f32 %v1219, %v1220
        %v1222 = vsel %vm899, %v1097, 0.0
        %v1223 = vadd.f32 %v1221, %v1222
        %v1224 = vsel %vm899, %v1098, 0.0
        %v1225 = vadd.f32 %v1223, %v1224
        %v1226 = vrot.slane %v1225, 4
        %v1227 = vadd.f32 %v1225, %v1226
        %v1228 = vrot.slane %v1227, 2
        %v1229 = vadd.f32 %v1227, %v1228
        %v1230 = vrot.slane %v1229, 1
        %v1231 = vadd.f32 %v1229, %v1230
        %1232 = vst.msk [vmem:[%s207] sm:$0x1] %vm1033, %v1231
        %s1233 = smul.u32 64, %s22
        %p1234 = scmp.lt.s32.totalorder %s1233, 127
        %s1235 = scalar_select %p1234, %s1233, 127
        %s1236 = smul.addr %s1235, 4
        %s1237 = scalar_lea.vmem %s2, %s1236
        %s1238 = sand.u32 %s103, 1
        %s1239 = scalar_lea.sflag [#allocation3], %s1238
        %s1240 = sand.u32 %s103, 1
        %s1241 = scalar_lea.vmem [#allocation2], %s1240
        %s1242 = sand.u32 %s129, 1
        %s1243 = scalar_lea.sflag [#allocation5], %s1242
        %s1244 = sand.u32 %s129, 1
        %s1245 = scalar_lea.vmem [#allocation4], %s1244
        // Predicated region
        $region29: #{tpu_custom_call.1} parent=27 // pred_check
          %p1246 = pneg %p87
        $region30: #{tpu_custom_call.1} parent=27 // pred_check_branch
          %1248 = sbr.rel (%p1246) target = $region32
        $region31: #{tpu_custom_call.1} parent=27 // pred_region
          %s1249 = smul.u32 64, %s22
        $region32: #{tpu_custom_call.1} parent=27 // pred_fallthru
          _
        // Predicated region
        $region33: #{tpu_custom_call.1} parent=27 // pred_check
          %p1250 = pneg %p113
        $region34: #{tpu_custom_call.1} parent=27 // pred_check_branch
          %1252 = sbr.rel (%p1250) target = $region36
        $region35: #{tpu_custom_call.1} parent=27 // pred_region
          %1254 = vsyncadd %s1239, 0
          %s1255 = scalar_lea.hbm %s3, %s22
          %s1257 = sshll.u32 %s1241, 4
          %s1258 = int_to_ptr.vmem [resolvable:$true] %s1257
          %s1259 = sshll.u32 %s1255, 4
          %s1260 = int_to_ptr.hbm [resolvable:$true] %s1259
          %1262 = dma.vmem_to_hbm [thread:$0]  %s1258, 16, %s1260, %s1239
        $region36: #{tpu_custom_call.1} parent=27 // pred_fallthru
          _
        // Predicated region
        $region37: #{tpu_custom_call.1} parent=27 // pred_check
          %p1263 = pneg %p139
        $region38: #{tpu_custom_call.1} parent=27 // pred_check_branch
          %1265 = sbr.rel (%p1263) target = $region40
        $region39: #{tpu_custom_call.1} parent=27 // pred_region
          %1267 = vsyncadd %s1243, 0
          %s1268 = scalar_lea.hbm %s4, %s22
          %s1270 = sshll.u32 %s1245, 4
          %s1271 = int_to_ptr.vmem [resolvable:$true] %s1270
          %s1272 = sshll.u32 %s1268, 4
          %s1273 = int_to_ptr.hbm [resolvable:$true] %s1272
          %1275 = dma.vmem_to_hbm [thread:$0]  %s1271, 16, %s1273, %s1243
        $region40: #{tpu_custom_call.1} parent=27 // pred_fallthru
          _
      $region28: #{tpu_custom_call.1} parent=5 // pred_fallthru
        _
      %p1276 = scmp.le.s32.totalorder 2, %s17
      // Predicated region
      $region41: #{tpu_custom_call.1} parent=5 // pred_check
        %p1277 = pneg %p1276
      $region42: #{tpu_custom_call.1} parent=5 // pred_check_branch
        %1279 = sbr.rel (%p1277) target = $region44
      $region43: #{tpu_custom_call.1} parent=5 // pred_region
        %s1280 = ssub.s32 %s17, 2
        // Predicated region
        $region45: #{tpu_custom_call.1} parent=43 // pred_check
          %p1281 = pneg %p93
        $region46: #{tpu_custom_call.1} parent=43 // pred_check_branch
          %1283 = sbr.rel (%p1281) target = $region48
        $region47: #{tpu_custom_call.1} parent=43 // pred_region
          %s1284 = smul.u32 64, %s23
          %p1285 = scmp.lt.s32.totalorder %s1284, 127
          %s1286 = scalar_select %p1285, %s1284, 127
          %s1287 = smul.addr %s1286, 4
          %s1288 = scalar_lea.vmem %s2, %s1287
        $region48: #{tpu_custom_call.1} parent=43 // pred_fallthru
          _
        // Predicated region
        $region49: #{tpu_custom_call.1} parent=43 // pred_check
          %p1289 = pneg %p119
        $region50: #{tpu_custom_call.1} parent=43 // pred_check_branch
          %1291 = sbr.rel (%p1289) target = $region52
        $region51: #{tpu_custom_call.1} parent=43 // pred_region
          %s1292 = sand.u32 %s104, 1
          %s1293 = scalar_lea.sflag [#allocation3], %s1292
          %s1294 = sand.u32 %s104, 1
          %s1295 = scalar_lea.vmem [#allocation2], %s1294
          %1297 = dma.done %s1293, 16
        $region52: #{tpu_custom_call.1} parent=43 // pred_fallthru
          _
        // Predicated region
        $region53: #{tpu_custom_call.1} parent=43 // pred_check
          %p1298 = pneg %p145
        $region54: #{tpu_custom_call.1} parent=43 // pred_check_branch
          %1300 = sbr.rel (%p1298) target = $region56
        $region55: #{tpu_custom_call.1} parent=43 // pred_region
          %s1301 = sand.u32 %s130, 1
          %s1302 = scalar_lea.sflag [#allocation5], %s1301
          %s1303 = sand.u32 %s130, 1
          %s1304 = scalar_lea.vmem [#allocation4], %s1303
          %1306 = dma.done %s1302, 16
        $region56: #{tpu_custom_call.1} parent=43 // pred_fallthru
          _
      $region44: #{tpu_custom_call.1} parent=5 // pred_fallthru
        _
    $region6: #{tpu_custom_call.1} parent=1 // loop_footer
      %s21 = sadd.s32 1, %s17
    $region7: #{tpu_custom_call.1} parent=1 // loop_footer_branch
      %16 = sbr.rel target = $region3
    $region8: #{tpu_custom_call.1} parent=1 // loop_exit
      _
    %1307 = vsyncpa [#allocation3], 1
    %s1308 = scalar_lea.sflag [#allocation3], 1
    %1309 = vsyncpa %s1308, 1
    %1310 = vsyncpa [#allocation5], 1
    %s1311 = scalar_lea.sflag [#allocation5], 1
    %1312 = vsyncpa %s1311, 1

</llo_original>
